<compile_context>
chip_gen: v5e
topology: v5e:2x2
jax: 0.10.0
libtpu: 0.0.40
codegen_flags: <defaults>
</compile_context>

<pallas_src>
import jax
import jax.numpy as jnp
from jax import lax
from jax.experimental import pallas as pl
from jax.experimental.pallas import tpu as pltpu

_BN_EPS = 1e-5


def _tap_masks(H, W):
    """(9, H*W) float32 {0,1} validity mask per 3x3 tap (tap t = 3*dy + dx)."""
    yy = jnp.arange(H, dtype=jnp.int32).reshape(H, 1)
    xx = jnp.arange(W, dtype=jnp.int32).reshape(1, W)
    masks = []
    for t in range(9):
        dy, dx = t // 3, t % 3
        m = ((yy + dy - 1 >= 0) & (yy + dy - 1 < H) &
             (xx + dx - 1 >= 0) & (xx + dx - 1 < W))
        masks.append(m.reshape(-1))
    return jnp.stack(masks).astype(jnp.float32)


def _make_fusion_kernel(num_conv3, H, W):
    """Kernel processing one batch element per grid step, all layers fused."""
    HW = H * W

    def kernel(*refs):
        # refs: x_ref, masks_ref, (w_ref, b_ref) per layer, o_ref
        x_ref, masks_ref = refs[0], refs[1]
        wb_refs = refs[2:2 + 2 * (num_conv3 + 1)]
        o_ref = refs[-1]

        masks = masks_ref[...]                              # (9, HW) 0/1 f32

        # ---- layer 0: 1x1 conv (+ folded BN) + ReLU = plain channel matmul ----
        z = x_ref[0]                                        # (Cin, HW), lane-dense
        w0, b0 = wb_refs[0][...], wb_refs[1][...]           # (C, Cin), (C, 1)
        z = jnp.maximum(
            jnp.dot(w0, z, preferred_element_type=jnp.float32) + b0, 0.0)

        # ---- 3x3 conv layers: im2col via lane rolls + border masks, 1 matmul each ----
        for li in range(num_conv3):
            w = wb_refs[2 + 2 * li][...]                    # (C, 9*C)
            b = wb_refs[3 + 2 * li][...]                    # (C, 1)
            taps = []
            for t in range(9):
                dy, dx = t // 3, t % 3
                off = (dy - 1) * W + (dx - 1)               # flat spatial shift of tap t
                if off == 0:
                    taps.append(z)                          # centre tap: no shift, no border
                else:
                    # shifted[:, idx] = z[:, idx + off]; wrapped lanes are zeroed by mask.
                    shifted = pltpu.roll(z, (-off) % HW, axis=1)
                    taps.append(shifted * masks[t:t + 1, :])
            p = jnp.concatenate(taps, axis=0)               # (9*C, HW) im2col patches
            z = jnp.maximum(
                jnp.dot(w, p, preferred_element_type=jnp.float32) + b, 0.0)

        o_ref[0] = z.astype(o_ref.dtype)

    return kernel


def fusion_layers_forward(x_nchw, params):
    """Pallas forward of FusionLayers (conv bias + eval-mode BN folded per layer).

    x_nchw : (B, Cin, H, W) float32
    params : list of (w_hwio, bias, gamma, beta, running_mean, running_var);
             params[0] is the 1x1 layer, the remaining entries are 3x3 layers.
    returns: (B, Cout, H, W) float32
    """
    B, Cin, H, W = x_nchw.shape
    HW = H * W
    Cout = params[0][0].shape[-1]
    num_conv3 = len(params) - 1

    # Fold conv bias + eval-mode BN into one affine (W_eff, b_eff) per layer and
    # reshape to the kernel layout: rows = out channels, cols = (tap, in-channel).
    fused_args, fused_specs = [], []
    for w, b, gamma, beta, mean, var in params:
        s = gamma / jnp.sqrt(var + _BN_EPS)                  # (C,)
        w_eff = w * s[None, None, None, :]                   # scale each out channel
        b_eff = s * (b - mean) + beta
        kh, kw, ci, co = w.shape
        w_k = w_eff.reshape(kh * kw * ci, co).T              # (co, kh*kw*ci)
        b_k = b_eff.reshape(co, 1)
        fused_args += [w_k, b_k]
        fused_specs += [pl.BlockSpec(w_k.shape, lambda bb: (0, 0)),
                        pl.BlockSpec(b_k.shape, lambda bb: (0, 0))]

    x3 = x_nchw.reshape(B, Cin, HW)        # free reshape: NCHW kept, spatial flattened
    masks = _tap_masks(H, W)               # (9, HW)

    out3 = pl.pallas_call(
        _make_fusion_kernel(num_conv3, H, W),
        out_shape=jax.ShapeDtypeStruct((B, Cout, HW), x_nchw.dtype),
        grid_spec=pltpu.PrefetchScalarGridSpec(
            num_scalar_prefetch=0,
            grid=(B,),
            in_specs=[pl.BlockSpec((1, Cin, HW), lambda bb: (bb, 0, 0)),
                      pl.BlockSpec((9, HW), lambda bb: (0, 0))] + fused_specs,
            out_specs=pl.BlockSpec((1, Cout, HW), lambda bb: (bb, 0, 0)),
        ),
        compiler_params=pltpu.CompilerParams(
            dimension_semantics=("parallel",)),
    )(x3, masks, *fused_args)

    return out3.reshape(B, Cout, H, W)     # free reshape back to (B, C, H, W)


def _reference(x_nchw, params):
    """Pure-JAX reference: conv -> bias -> eval-mode BN -> ReLU per layer (un-fused)."""
    x = jnp.transpose(x_nchw, (0, 2, 3, 1))                  # NHWC
    dn = ('NHWC', 'HWIO', 'NHWC')
    for li, (w, b, gamma, beta, mean, var) in enumerate(params):
        pad = 0 if li == 0 else 1
        y = lax.conv_general_dilated(x, w, (1, 1), ((pad, pad), (pad, pad)),
                                     dimension_numbers=dn)
        y = y + b
        y = (y - mean) / jnp.sqrt(var + _BN_EPS) * gamma + beta
        x = jax.nn.relu(y)
    return jnp.transpose(x, (0, 3, 1, 2))


def _init_params(key, in_channels, out_channels, num_fusion_layers):
    """Per-layer (w_hwio, bias, gamma, beta, running_mean, running_var)."""
    layers = []
    layer_keys = jax.random.split(key, num_fusion_layers + 1)
    for li in range(num_fusion_layers + 1):
        k = 1 if li == 0 else 3
        cin = in_channels if li == 0 else out_channels
        kw_, kb, kg, kbe, km, kv = jax.random.split(layer_keys[li], 6)
        fan_in = cin * k * k
        bound = (3.0 / fan_in) ** 0.5      # c2_xavier_fill ~ kaiming_uniform(a=1)
        w = jax.random.uniform(kw_, (k, k, cin, out_channels), jnp.float32,
                               -bound, bound)
        b = 0.05 * jax.random.normal(kb, (out_channels,), jnp.float32)
        gamma = jax.random.uniform(kg, (out_channels,), jnp.float32, 0.5, 1.5)
        beta = 0.1 * jax.random.normal(kbe, (out_channels,), jnp.float32)
        mean = 0.1 * jax.random.normal(km, (out_channels,), jnp.float32)
        var = jax.random.uniform(kv, (out_channels,), jnp.float32, 0.5, 1.5)
        layers.append((w, b, gamma, beta, mean, var))
    return layers


if __name__ == "__main__":
    B, Cin, H, W = 2, 4, 16, 16
    out_channels = 8
    num_fusion_layers = 2

    key = jax.random.PRNGKey(0)
    kx, kp = jax.random.split(key)
    x = jax.random.normal(kx, (B, Cin, H, W), jnp.float32)
    params = _init_params(kp, Cin, out_channels, num_fusion_layers)

    out = fusion_layers_forward(x, params)
    out = jax.block_until_ready(out)

    ref = _reference(x, params)
    assert out.shape == (B, out_channels, H, W)
    assert jnp.allclose(out, ref, rtol=2e-3, atol=2e-3), "mismatch vs reference"

    print("KERNEL_OK")
</pallas_src>

<mosaic_0001>
module attributes {stable_mosaic.version = 11 : i64} {
  func.func @kernel(%arg0: i32, %arg1: memref<1x4x256xf32, #tpu.memory_space<vmem>>, %arg2: memref<9x256xf32, #tpu.memory_space<vmem>>, %arg3: memref<8x4xf32, #tpu.memory_space<vmem>>, %arg4: memref<8x1xf32, #tpu.memory_space<vmem>>, %arg5: memref<8x72xf32, #tpu.memory_space<vmem>>, %arg6: memref<8x1xf32, #tpu.memory_space<vmem>>, %arg7: memref<8x72xf32, #tpu.memory_space<vmem>>, %arg8: memref<8x1xf32, #tpu.memory_space<vmem>>, %arg9: memref<1x8x256xf32, #tpu.memory_space<vmem>>) attributes {dimension_semantics = [#tpu.dimension_semantics<parallel>], iteration_bounds = array<i64: 2>, scalar_prefetch = 0 : i64, scratch_operands = 0 : i64, tpu.core_type = #tpu.core_type<tc>, window_params = [{transform_indices = @transform_0, window_bounds = array<i64: 1, 4, 256>}, {pipeline_mode = #tpu.pipeline_mode<synchronous>, transform_indices = @transform_1, window_bounds = array<i64: 9, 256>}, {pipeline_mode = #tpu.pipeline_mode<synchronous>, transform_indices = @transform_2, window_bounds = array<i64: 8, 4>}, {pipeline_mode = #tpu.pipeline_mode<synchronous>, transform_indices = @transform_3, window_bounds = array<i64: 8, 1>}, {pipeline_mode = #tpu.pipeline_mode<synchronous>, transform_indices = @transform_4, window_bounds = array<i64: 8, 72>}, {pipeline_mode = #tpu.pipeline_mode<synchronous>, transform_indices = @transform_5, window_bounds = array<i64: 8, 1>}, {pipeline_mode = #tpu.pipeline_mode<synchronous>, transform_indices = @transform_6, window_bounds = array<i64: 8, 72>}, {pipeline_mode = #tpu.pipeline_mode<synchronous>, transform_indices = @transform_7, window_bounds = array<i64: 8, 1>}, {transform_indices = @transform_8, window_bounds = array<i64: 1, 8, 256>}]} {
    %c0 = arith.constant 0 : index
    %c0_0 = arith.constant 0 : index
    %0 = vector.load %arg2[%c0, %c0_0] : memref<9x256xf32, #tpu.memory_space<vmem>>, vector<9x256xf32>
    %c0_1 = arith.constant 0 : index
    %c0_2 = arith.constant 0 : index
    %c0_3 = arith.constant 0 : index
    %1 = vector.load %arg1[%c0_1, %c0_2, %c0_3] : memref<1x4x256xf32, #tpu.memory_space<vmem>>, vector<1x4x256xf32>
    %2 = vector.shape_cast %1 : vector<1x4x256xf32> to vector<4x256xf32>
    %c0_4 = arith.constant 0 : index
    %c0_5 = arith.constant 0 : index
    %3 = vector.load %arg3[%c0_4, %c0_5] : memref<8x4xf32, #tpu.memory_space<vmem>>, vector<8x4xf32>
    %c0_6 = arith.constant 0 : index
    %c0_7 = arith.constant 0 : index
    %4 = vector.load %arg4[%c0_6, %c0_7] : memref<8x1xf32, #tpu.memory_space<vmem>>, vector<8x1xf32>
    %cst = arith.constant dense<0.000000e+00> : vector<8x256xf32>
    %5 = tpu.matmul %3, %2, %cst {dimension_numbers = #tpu.dot_dimension_numbers<[1], [0], [0], [1], [0, 0, 1, 1], [], []>} : vector<8x4xf32>, vector<4x256xf32>, vector<8x256xf32> -> vector<8x256xf32>
    %6 = vector.broadcast %4 : vector<8x1xf32> to vector<8x256xf32>
    %7 = arith.addf %5, %6 : vector<8x256xf32>
    %cst_8 = arith.constant 0.000000e+00 : f32
    %8 = vector.broadcast %cst_8 : f32 to vector<8x256xf32>
    %9 = arith.maximumf %7, %8 : vector<8x256xf32>
    %c0_9 = arith.constant 0 : index
    %c0_10 = arith.constant 0 : index
    %10 = vector.load %arg5[%c0_9, %c0_10] : memref<8x72xf32, #tpu.memory_space<vmem>>, vector<8x72xf32>
    %c0_11 = arith.constant 0 : index
    %c0_12 = arith.constant 0 : index
    %11 = vector.load %arg6[%c0_11, %c0_12] : memref<8x1xf32, #tpu.memory_space<vmem>>, vector<8x1xf32>
    %c17_i32 = arith.constant 17 : i32
    %12 = tpu.dynamic_rotate %9 by %c17_i32 dim 1 : vector<8x256xf32>, i32 -> vector<8x256xf32>
    %13 = vector.extract_strided_slice %0 {offsets = [0, 0], sizes = [1, 256], strides = [1, 1]} : vector<9x256xf32> to vector<1x256xf32>
    %14 = vector.broadcast %13 : vector<1x256xf32> to vector<8x256xf32>
    %15 = arith.mulf %12, %14 : vector<8x256xf32>
    %c16_i32 = arith.constant 16 : i32
    %16 = tpu.dynamic_rotate %9 by %c16_i32 dim 1 : vector<8x256xf32>, i32 -> vector<8x256xf32>
    %17 = vector.extract_strided_slice %0 {offsets = [1, 0], sizes = [1, 256], strides = [1, 1]} : vector<9x256xf32> to vector<1x256xf32>
    %18 = vector.broadcast %17 : vector<1x256xf32> to vector<8x256xf32>
    %19 = arith.mulf %16, %18 : vector<8x256xf32>
    %c15_i32 = arith.constant 15 : i32
    %20 = tpu.dynamic_rotate %9 by %c15_i32 dim 1 : vector<8x256xf32>, i32 -> vector<8x256xf32>
    %21 = vector.extract_strided_slice %0 {offsets = [2, 0], sizes = [1, 256], strides = [1, 1]} : vector<9x256xf32> to vector<1x256xf32>
    %22 = vector.broadcast %21 : vector<1x256xf32> to vector<8x256xf32>
    %23 = arith.mulf %20, %22 : vector<8x256xf32>
    %c1_i32 = arith.constant 1 : i32
    %24 = tpu.dynamic_rotate %9 by %c1_i32 dim 1 : vector<8x256xf32>, i32 -> vector<8x256xf32>
    %25 = vector.extract_strided_slice %0 {offsets = [3, 0], sizes = [1, 256], strides = [1, 1]} : vector<9x256xf32> to vector<1x256xf32>
    %26 = vector.broadcast %25 : vector<1x256xf32> to vector<8x256xf32>
    %27 = arith.mulf %24, %26 : vector<8x256xf32>
    %c255_i32 = arith.constant 255 : i32
    %28 = tpu.dynamic_rotate %9 by %c255_i32 dim 1 : vector<8x256xf32>, i32 -> vector<8x256xf32>
    %29 = vector.extract_strided_slice %0 {offsets = [5, 0], sizes = [1, 256], strides = [1, 1]} : vector<9x256xf32> to vector<1x256xf32>
    %30 = vector.broadcast %29 : vector<1x256xf32> to vector<8x256xf32>
    %31 = arith.mulf %28, %30 : vector<8x256xf32>
    %c241_i32 = arith.constant 241 : i32
    %32 = tpu.dynamic_rotate %9 by %c241_i32 dim 1 : vector<8x256xf32>, i32 -> vector<8x256xf32>
    %33 = vector.extract_strided_slice %0 {offsets = [6, 0], sizes = [1, 256], strides = [1, 1]} : vector<9x256xf32> to vector<1x256xf32>
    %34 = vector.broadcast %33 : vector<1x256xf32> to vector<8x256xf32>
    %35 = arith.mulf %32, %34 : vector<8x256xf32>
    %c240_i32 = arith.constant 240 : i32
    %36 = tpu.dynamic_rotate %9 by %c240_i32 dim 1 : vector<8x256xf32>, i32 -> vector<8x256xf32>
    %37 = vector.extract_strided_slice %0 {offsets = [7, 0], sizes = [1, 256], strides = [1, 1]} : vector<9x256xf32> to vector<1x256xf32>
    %38 = vector.broadcast %37 : vector<1x256xf32> to vector<8x256xf32>
    %39 = arith.mulf %36, %38 : vector<8x256xf32>
    %c239_i32 = arith.constant 239 : i32
    %40 = tpu.dynamic_rotate %9 by %c239_i32 dim 1 : vector<8x256xf32>, i32 -> vector<8x256xf32>
    %41 = vector.extract_strided_slice %0 {offsets = [8, 0], sizes = [1, 256], strides = [1, 1]} : vector<9x256xf32> to vector<1x256xf32>
    %42 = vector.broadcast %41 : vector<1x256xf32> to vector<8x256xf32>
    %43 = arith.mulf %40, %42 : vector<8x256xf32>
    %44 = tpu.concatenate %15, %19, %23, %27, %9, %31, %35, %39, %43 in 0 : vector<8x256xf32>, vector<8x256xf32>, vector<8x256xf32>, vector<8x256xf32>, vector<8x256xf32>, vector<8x256xf32>, vector<8x256xf32>, vector<8x256xf32>, vector<8x256xf32> -> vector<72x256xf32>
    %cst_13 = arith.constant dense<0.000000e+00> : vector<8x256xf32>
    %45 = tpu.matmul %10, %44, %cst_13 {dimension_numbers = #tpu.dot_dimension_numbers<[1], [0], [0], [1], [0, 0, 1, 1], [], []>} : vector<8x72xf32>, vector<72x256xf32>, vector<8x256xf32> -> vector<8x256xf32>
    %46 = vector.broadcast %11 : vector<8x1xf32> to vector<8x256xf32>
    %47 = arith.addf %45, %46 : vector<8x256xf32>
    %cst_14 = arith.constant 0.000000e+00 : f32
    %48 = vector.broadcast %cst_14 : f32 to vector<8x256xf32>
    %49 = arith.maximumf %47, %48 : vector<8x256xf32>
    %c0_15 = arith.constant 0 : index
    %c0_16 = arith.constant 0 : index
    %50 = vector.load %arg7[%c0_15, %c0_16] : memref<8x72xf32, #tpu.memory_space<vmem>>, vector<8x72xf32>
    %c0_17 = arith.constant 0 : index
    %c0_18 = arith.constant 0 : index
    %51 = vector.load %arg8[%c0_17, %c0_18] : memref<8x1xf32, #tpu.memory_space<vmem>>, vector<8x1xf32>
    %c17_i32_19 = arith.constant 17 : i32
    %52 = tpu.dynamic_rotate %49 by %c17_i32_19 dim 1 : vector<8x256xf32>, i32 -> vector<8x256xf32>
    %53 = vector.extract_strided_slice %0 {offsets = [0, 0], sizes = [1, 256], strides = [1, 1]} : vector<9x256xf32> to vector<1x256xf32>
    %54 = vector.broadcast %53 : vector<1x256xf32> to vector<8x256xf32>
    %55 = arith.mulf %52, %54 : vector<8x256xf32>
    %c16_i32_20 = arith.constant 16 : i32
    %56 = tpu.dynamic_rotate %49 by %c16_i32_20 dim 1 : vector<8x256xf32>, i32 -> vector<8x256xf32>
    %57 = vector.extract_strided_slice %0 {offsets = [1, 0], sizes = [1, 256], strides = [1, 1]} : vector<9x256xf32> to vector<1x256xf32>
    %58 = vector.broadcast %57 : vector<1x256xf32> to vector<8x256xf32>
    %59 = arith.mulf %56, %58 : vector<8x256xf32>
    %c15_i32_21 = arith.constant 15 : i32
    %60 = tpu.dynamic_rotate %49 by %c15_i32_21 dim 1 : vector<8x256xf32>, i32 -> vector<8x256xf32>
    %61 = vector.extract_strided_slice %0 {offsets = [2, 0], sizes = [1, 256], strides = [1, 1]} : vector<9x256xf32> to vector<1x256xf32>
    %62 = vector.broadcast %61 : vector<1x256xf32> to vector<8x256xf32>
    %63 = arith.mulf %60, %62 : vector<8x256xf32>
    %c1_i32_22 = arith.constant 1 : i32
    %64 = tpu.dynamic_rotate %49 by %c1_i32_22 dim 1 : vector<8x256xf32>, i32 -> vector<8x256xf32>
    %65 = vector.extract_strided_slice %0 {offsets = [3, 0], sizes = [1, 256], strides = [1, 1]} : vector<9x256xf32> to vector<1x256xf32>
    %66 = vector.broadcast %65 : vector<1x256xf32> to vector<8x256xf32>
    %67 = arith.mulf %64, %66 : vector<8x256xf32>
    %c255_i32_23 = arith.constant 255 : i32
    %68 = tpu.dynamic_rotate %49 by %c255_i32_23 dim 1 : vector<8x256xf32>, i32 -> vector<8x256xf32>
    %69 = vector.extract_strided_slice %0 {offsets = [5, 0], sizes = [1, 256], strides = [1, 1]} : vector<9x256xf32> to vector<1x256xf32>
    %70 = vector.broadcast %69 : vector<1x256xf32> to vector<8x256xf32>
    %71 = arith.mulf %68, %70 : vector<8x256xf32>
    %c241_i32_24 = arith.constant 241 : i32
    %72 = tpu.dynamic_rotate %49 by %c241_i32_24 dim 1 : vector<8x256xf32>, i32 -> vector<8x256xf32>
    %73 = vector.extract_strided_slice %0 {offsets = [6, 0], sizes = [1, 256], strides = [1, 1]} : vector<9x256xf32> to vector<1x256xf32>
    %74 = vector.broadcast %73 : vector<1x256xf32> to vector<8x256xf32>
    %75 = arith.mulf %72, %74 : vector<8x256xf32>
    %c240_i32_25 = arith.constant 240 : i32
    %76 = tpu.dynamic_rotate %49 by %c240_i32_25 dim 1 : vector<8x256xf32>, i32 -> vector<8x256xf32>
    %77 = vector.extract_strided_slice %0 {offsets = [7, 0], sizes = [1, 256], strides = [1, 1]} : vector<9x256xf32> to vector<1x256xf32>
    %78 = vector.broadcast %77 : vector<1x256xf32> to vector<8x256xf32>
    %79 = arith.mulf %76, %78 : vector<8x256xf32>
    %c239_i32_26 = arith.constant 239 : i32
    %80 = tpu.dynamic_rotate %49 by %c239_i32_26 dim 1 : vector<8x256xf32>, i32 -> vector<8x256xf32>
    %81 = vector.extract_strided_slice %0 {offsets = [8, 0], sizes = [1, 256], strides = [1, 1]} : vector<9x256xf32> to vector<1x256xf32>
    %82 = vector.broadcast %81 : vector<1x256xf32> to vector<8x256xf32>
    %83 = arith.mulf %80, %82 : vector<8x256xf32>
    %84 = tpu.concatenate %55, %59, %63, %67, %49, %71, %75, %79, %83 in 0 : vector<8x256xf32>, vector<8x256xf32>, vector<8x256xf32>, vector<8x256xf32>, vector<8x256xf32>, vector<8x256xf32>, vector<8x256xf32>, vector<8x256xf32>, vector<8x256xf32> -> vector<72x256xf32>
    %cst_27 = arith.constant dense<0.000000e+00> : vector<8x256xf32>
    %85 = tpu.matmul %50, %84, %cst_27 {dimension_numbers = #tpu.dot_dimension_numbers<[1], [0], [0], [1], [0, 0, 1, 1], [], []>} : vector<8x72xf32>, vector<72x256xf32>, vector<8x256xf32> -> vector<8x256xf32>
    %86 = vector.broadcast %51 : vector<8x1xf32> to vector<8x256xf32>
    %87 = arith.addf %85, %86 : vector<8x256xf32>
    %cst_28 = arith.constant 0.000000e+00 : f32
    %88 = vector.broadcast %cst_28 : f32 to vector<8x256xf32>
    %89 = arith.maximumf %87, %88 : vector<8x256xf32>
    %c0_29 = arith.constant 0 : index
    %c0_30 = arith.constant 0 : index
    %c0_31 = arith.constant 0 : index
    %90 = vector.load %arg9[%c0_29, %c0_30, %c0_31] : memref<1x8x256xf32, #tpu.memory_space<vmem>>, vector<1x8x256xf32>
    %91 = vector.shape_cast %90 : vector<1x8x256xf32> to vector<8x256xf32>
    %92 = vector.shape_cast %89 : vector<8x256xf32> to vector<1x8x256xf32>
    tpu.vector_store %arg9[%c0_29, %c0_30, %c0_31], %92 {strides = array<i32>} : memref<1x8x256xf32, #tpu.memory_space<vmem>>, vector<1x8x256xf32>,
    return
  }
  func.func @transform_0(%arg0: i32) -> (i32, i32, i32) {
    %c0_i32 = arith.constant 0 : i32
    %c0_i32_0 = arith.constant 0 : i32
    %c0_i32_1 = arith.constant 0 : i32
    return %arg0, %c0_i32, %c0_i32_0 : i32, i32, i32
  }
  func.func @transform_1(%arg0: i32) -> (i32, i32) {
    %c0_i32 = arith.constant 0 : i32
    %c0_i32_0 = arith.constant 0 : i32
    %c0_i32_1 = arith.constant 0 : i32
    return %c0_i32, %c0_i32_0 : i32, i32
  }
  func.func @transform_2(%arg0: i32) -> (i32, i32) {
    %c0_i32 = arith.constant 0 : i32
    %c0_i32_0 = arith.constant 0 : i32
    %c0_i32_1 = arith.constant 0 : i32
    return %c0_i32, %c0_i32_0 : i32, i32
  }
  func.func @transform_3(%arg0: i32) -> (i32, i32) {
    %c0_i32 = arith.constant 0 : i32
    %c0_i32_0 = arith.constant 0 : i32
    %c0_i32_1 = arith.constant 0 : i32
    return %c0_i32, %c0_i32_0 : i32, i32
  }
  func.func @transform_4(%arg0: i32) -> (i32, i32) {
    %c0_i32 = arith.constant 0 : i32
    %c0_i32_0 = arith.constant 0 : i32
    %c0_i32_1 = arith.constant 0 : i32
    return %c0_i32, %c0_i32_0 : i32, i32
  }
  func.func @transform_5(%arg0: i32) -> (i32, i32) {
    %c0_i32 = arith.constant 0 : i32
    %c0_i32_0 = arith.constant 0 : i32
    %c0_i32_1 = arith.constant 0 : i32
    return %c0_i32, %c0_i32_0 : i32, i32
  }
  func.func @transform_6(%arg0: i32) -> (i32, i32) {
    %c0_i32 = arith.constant 0 : i32
    %c0_i32_0 = arith.constant 0 : i32
    %c0_i32_1 = arith.constant 0 : i32
    return %c0_i32, %c0_i32_0 : i32, i32
  }
  func.func @transform_7(%arg0: i32) -> (i32, i32) {
    %c0_i32 = arith.constant 0 : i32
    %c0_i32_0 = arith.constant 0 : i32
    %c0_i32_1 = arith.constant 0 : i32
    return %c0_i32, %c0_i32_0 : i32, i32
  }
  func.func @transform_8(%arg0: i32) -> (i32, i32, i32) {
    %c0_i32 = arith.constant 0 : i32
    %c0_i32_0 = arith.constant 0 : i32
    %c0_i32_1 = arith.constant 0 : i32
    return %arg0, %c0_i32, %c0_i32_0 : i32, i32, i32
  }
}

</mosaic_0001>

<llo_original>
// kernel: tpu_custom_call.1
$region0: #{tpu_custom_call.1}
  #allocation0 [shape = 'u32[]', space=smem, size = 0x4, offset = 0x4, fixed_abs, tag = 'smem constant byte address 0x4 - core index']
  #allocation1 [shape = 'u32[72,128]{1,0:T(1,128)}', space=vmem, size = 0x9000, scoped, tag = 'internal scratch']
  %s0 = inlined_call_operand.vmem [shape: f32[2,4,256], index: 0, kind: input, shape index: {}]
  %s1 = inlined_call_operand.hbm [shape: f32[9,256], index: 1, kind: input, shape index: {}]
  %s2 = inlined_call_operand.vmem [shape: f32[8,4], index: 2, kind: input, shape index: {}]
  %s3 = inlined_call_operand.vmem [shape: f32[8,1], index: 3, kind: input, shape index: {}]
  %s4 = inlined_call_operand.vmem [shape: f32[8,72], index: 4, kind: input, shape index: {}]
  %s5 = inlined_call_operand.vmem [shape: f32[8,1], index: 5, kind: input, shape index: {}]
  %s6 = inlined_call_operand.vmem [shape: f32[8,72], index: 6, kind: input, shape index: {}]
  %s7 = inlined_call_operand.vmem [shape: f32[8,1], index: 7, kind: input, shape index: {}]
  %s8 = inlined_call_operand.hbm [shape: f32[2,8,256], index: 8, kind: output, shape index: {}]
  %s9 = sld [smem:[#allocation0]]
  $region69: #{tpu_custom_call.1} parent=0
    _
  %s11 = ssub.s32 1, %s9
  %s12 = scalar_select 0, %s11, %s9
  $region1: #{tpu_custom_call.1} parent=0
    #allocation2 [shape = 'u8[16384]{0}', space=vmem, size = 0x4000, scoped, tag = 'input window, operand 1, single buffered']
    #allocation3 [shape = 's32[2]{0}', space=sflag, size = 0x8, scoped, tag = 'scoped memory for tpu_custom_call.1']
    #allocation4 [shape = 's32[2]{0}', space=sflag, size = 0x8, scoped, tag = 'scoped memory for tpu_custom_call.1']
    #allocation5 [shape = 'u8[16384]{0}', space=vmem, size = 0x4000, scoped, tag = 'output window, operand 0']
    %13 = vsyncpa [#allocation3], 0
    %14 = vsyncpa [#allocation4], 0
    %s15 = scalar_lea.sflag [#allocation4], 1
    %16 = vsyncpa %s15, 0
    loop: start=0, step=1, limit=4
    $region2: #{tpu_custom_call.1} parent=1 // loop_pre_header
      _
    $region3: #{tpu_custom_call.1} parent=1 // loop_header
      %s18 = sphi 0, %s22
      %p19 = scmp.ge.s32.totalorder %s18, 4
      %s28 = sphi 0, %s30
      %s31 = sphi 0, %s28
      %s32 = sphi 0, %s31
      %s48 = sphi 0, %s32
      %s52 = sphi 0, %s52
      %s54 = sphi 0, %s52
      %s55 = sphi 0, %s54
      %s69 = sphi 0, %s55
      %s73 = sphi 0, %s73
      %s75 = sphi 0, %s73
      %s76 = sphi 0, %s75
      %s90 = sphi 0, %s76
      %s94 = sphi 0, %s94
      %s96 = sphi 0, %s94
      %s97 = sphi 0, %s96
      %s111 = sphi 0, %s97
      %s115 = sphi 0, %s115
      %s117 = sphi 0, %s115
      %s118 = sphi 0, %s117
      %s132 = sphi 0, %s118
      %s136 = sphi 0, %s136
      %s138 = sphi 0, %s136
      %s139 = sphi 0, %s138
      %s153 = sphi 0, %s139
      %s157 = sphi 0, %s157
      %s159 = sphi 0, %s157
      %s160 = sphi 0, %s159
      %s174 = sphi 0, %s160
      %s178 = sphi 0, %s178
      %s180 = sphi 0, %s178
      %s181 = sphi 0, %s180
      %s195 = sphi 0, %s181
      %s201 = sphi 0, %s203
      %s204 = sphi 0, %s201
      %s205 = sphi 0, %s204
      %s221 = sphi 0, %s205
    $region4: #{tpu_custom_call.1} parent=1 // loop_header_branch
      %21 = sbr.rel (%p19) target = $region8
    $region5: #{tpu_custom_call.1} parent=1 // loop_body
      %s23 = ssub.s32 %s18, 1
      %s24 = ssub.s32 %s18, 2
      %s25 = sadd.s32 %s18, 1
      %s26 = ssub.s32 %s18, %s25
      %p27 = scmp.eq.s32.totalorder %s26, 0
      %s29 = sadd.s32 %s28, 1
      %s30 = scalar_select %p27, %s28, %s29
      %p33 = pneg %p27
      %p34 = scmp.eq.s32.totalorder %s18, 1
      %p35 = por %p33, %p34
      %p36 = scmp.ne.s32.totalorder %s28, %s31
      %p37 = scmp.eq.s32.totalorder %s18, 0
      %p38 = por %p36, %p37
      %p39 = scmp.ne.s32.totalorder %s28, %s31
      %p40 = scmp.eq.s32.totalorder %s23, 1
      %p41 = por %p39, %p40
      %p42 = scmp.ne.s32.totalorder %s31, %s32
      %p43 = scmp.eq.s32.totalorder %s23, 0
      %p44 = por %p42, %p43
      %p45 = scmp.ne.s32.totalorder %s31, %s32
      %p46 = scmp.eq.s32.totalorder %s24, 1
      %p47 = por %p45, %p46
      %p49 = scmp.ne.s32.totalorder %s32, %s48
      %p50 = scmp.eq.s32.totalorder %s24, 0
      %p51 = por %p49, %p50
      %s53 = sadd.s32 %s52, 1
      %p56 = scmp.eq.s32.totalorder %s18, 1
      %p57 = scmp.ne.s32.totalorder %s52, %s54
      %p58 = scmp.eq.s32.totalorder %s18, 0
      %p59 = por %p57, %p58
      %p60 = scmp.ne.s32.totalorder %s52, %s54
      %p61 = scmp.eq.s32.totalorder %s23, 1
      %p62 = por %p60, %p61
      %p63 = scmp.ne.s32.totalorder %s54, %s55
      %p64 = scmp.eq.s32.totalorder %s23, 0
      %p65 = por %p63, %p64
      %p66 = scmp.ne.s32.totalorder %s54, %s55
      %p67 = scmp.eq.s32.totalorder %s24, 1
      %p68 = por %p66, %p67
      %p70 = scmp.ne.s32.totalorder %s55, %s69
      %p71 = scmp.eq.s32.totalorder %s24, 0
      %p72 = por %p70, %p71
      %s74 = sadd.s32 %s73, 1
      %p77 = scmp.eq.s32.totalorder %s18, 1
      %p78 = scmp.ne.s32.totalorder %s73, %s75
      %p79 = scmp.eq.s32.totalorder %s18, 0
      %p80 = por %p78, %p79
      %p81 = scmp.ne.s32.totalorder %s73, %s75
      %p82 = scmp.eq.s32.totalorder %s23, 1
      %p83 = por %p81, %p82
      %p84 = scmp.ne.s32.totalorder %s75, %s76
      %p85 = scmp.eq.s32.totalorder %s23, 0
      %p86 = por %p84, %p85
      %p87 = scmp.ne.s32.totalorder %s75, %s76
      %p88 = scmp.eq.s32.totalorder %s24, 1
      %p89 = por %p87, %p88
      %p91 = scmp.ne.s32.totalorder %s76, %s90
      %p92 = scmp.eq.s32.totalorder %s24, 0
      %p93 = por %p91, %p92
      %s95 = sadd.s32 %s94, 1
      %p98 = scmp.eq.s32.totalorder %s18, 1
      %p99 = scmp.ne.s32.totalorder %s94, %s96
      %p100 = scmp.eq.s32.totalorder %s18, 0
      %p101 = por %p99, %p100
      %p102 = scmp.ne.s32.totalorder %s94, %s96
      %p103 = scmp.eq.s32.totalorder %s23, 1
      %p104 = por %p102, %p103
      %p105 = scmp.ne.s32.totalorder %s96, %s97
      %p106 = scmp.eq.s32.totalorder %s23, 0
      %p107 = por %p105, %p106
      %p108 = scmp.ne.s32.totalorder %s96, %s97
      %p109 = scmp.eq.s32.totalorder %s24, 1
      %p110 = por %p108, %p109
      %p112 = scmp.ne.s32.totalorder %s97, %s111
      %p113 = scmp.eq.s32.totalorder %s24, 0
      %p114 = por %p112, %p113
      %s116 = sadd.s32 %s115, 1
      %p119 = scmp.eq.s32.totalorder %s18, 1
      %p120 = scmp.ne.s32.totalorder %s115, %s117
      %p121 = scmp.eq.s32.totalorder %s18, 0
      %p122 = por %p120, %p121
      %p123 = scmp.ne.s32.totalorder %s115, %s117
      %p124 = scmp.eq.s32.totalorder %s23, 1
      %p125 = por %p123, %p124
      %p126 = scmp.ne.s32.totalorder %s117, %s118
      %p127 = scmp.eq.s32.totalorder %s23, 0
      %p128 = por %p126, %p127
      %p129 = scmp.ne.s32.totalorder %s117, %s118
      %p130 = scmp.eq.s32.totalorder %s24, 1
      %p131 = por %p129, %p130
      %p133 = scmp.ne.s32.totalorder %s118, %s132
      %p134 = scmp.eq.s32.totalorder %s24, 0
      %p135 = por %p133, %p134
      %s137 = sadd.s32 %s136, 1
      %p140 = scmp.eq.s32.totalorder %s18, 1
      %p141 = scmp.ne.s32.totalorder %s136, %s138
      %p142 = scmp.eq.s32.totalorder %s18, 0
      %p143 = por %p141, %p142
      %p144 = scmp.ne.s32.totalorder %s136, %s138
      %p145 = scmp.eq.s32.totalorder %s23, 1
      %p146 = por %p144, %p145
      %p147 = scmp.ne.s32.totalorder %s138, %s139
      %p148 = scmp.eq.s32.totalorder %s23, 0
      %p149 = por %p147, %p148
      %p150 = scmp.ne.s32.totalorder %s138, %s139
      %p151 = scmp.eq.s32.totalorder %s24, 1
      %p152 = por %p150, %p151
      %p154 = scmp.ne.s32.totalorder %s139, %s153
      %p155 = scmp.eq.s32.totalorder %s24, 0
      %p156 = por %p154, %p155
      %s158 = sadd.s32 %s157, 1
      %p161 = scmp.eq.s32.totalorder %s18, 1
      %p162 = scmp.ne.s32.totalorder %s157, %s159
      %p163 = scmp.eq.s32.totalorder %s18, 0
      %p164 = por %p162, %p163
      %p165 = scmp.ne.s32.totalorder %s157, %s159
      %p166 = scmp.eq.s32.totalorder %s23, 1
      %p167 = por %p165, %p166
      %p168 = scmp.ne.s32.totalorder %s159, %s160
      %p169 = scmp.eq.s32.totalorder %s23, 0
      %p170 = por %p168, %p169
      %p171 = scmp.ne.s32.totalorder %s159, %s160
      %p172 = scmp.eq.s32.totalorder %s24, 1
      %p173 = por %p171, %p172
      %p175 = scmp.ne.s32.totalorder %s160, %s174
      %p176 = scmp.eq.s32.totalorder %s24, 0
      %p177 = por %p175, %p176
      %s179 = sadd.s32 %s178, 1
      %p182 = scmp.eq.s32.totalorder %s18, 1
      %p183 = scmp.ne.s32.totalorder %s178, %s180
      %p184 = scmp.eq.s32.totalorder %s18, 0
      %p185 = por %p183, %p184
      %p186 = scmp.ne.s32.totalorder %s178, %s180
      %p187 = scmp.eq.s32.totalorder %s23, 1
      %p188 = por %p186, %p187
      %p189 = scmp.ne.s32.totalorder %s180, %s181
      %p190 = scmp.eq.s32.totalorder %s23, 0
      %p191 = por %p189, %p190
      %p192 = scmp.ne.s32.totalorder %s180, %s181
      %p193 = scmp.eq.s32.totalorder %s24, 1
      %p194 = por %p192, %p193
      %p196 = scmp.ne.s32.totalorder %s181, %s195
      %p197 = scmp.eq.s32.totalorder %s24, 0
      %p198 = por %p196, %p197
      %s199 = ssub.s32 %s18, %s25
      %p200 = scmp.eq.s32.totalorder %s199, 0
      %s202 = sadd.s32 %s201, 1
      %s203 = scalar_select %p200, %s201, %s202
      %p206 = pneg %p200
      %p207 = scmp.eq.s32.totalorder %s18, 1
      %p208 = por %p206, %p207
      %p209 = scmp.ne.s32.totalorder %s201, %s204
      %p210 = scmp.eq.s32.totalorder %s18, 0
      %p211 = por %p209, %p210
      %p212 = scmp.ne.s32.totalorder %s201, %s204
      %p213 = scmp.eq.s32.totalorder %s23, 1
      %p214 = por %p212, %p213
      %p215 = scmp.ne.s32.totalorder %s204, %s205
      %p216 = scmp.eq.s32.totalorder %s23, 0
      %p217 = por %p215, %p216
      %p218 = scmp.ne.s32.totalorder %s204, %s205
      %p219 = scmp.eq.s32.totalorder %s24, 1
      %p220 = por %p218, %p219
      %p222 = scmp.ne.s32.totalorder %s205, %s221
      %p223 = scmp.eq.s32.totalorder %s24, 0
      %p224 = por %p222, %p223
      %p225 = scmp.le.s32.totalorder 1, %s18
      %p226 = scmp.lt.s32.totalorder %s18, 3
      %p227 = pnand %p225, %p226
      %p228 = pneg %p227
      // Predicated region
      $region9: #{tpu_custom_call.1} parent=5 // pred_check
        _
      $region10: #{tpu_custom_call.1} parent=5 // pred_check_branch
        %230 = sbr.rel (%p227) target = $region12
      $region11: #{tpu_custom_call.1} parent=5 // pred_region
        %s231 = ssub.s32 %s18, 1
        // Predicated region
        $region13: #{tpu_custom_call.1} parent=11 // pred_check
          %p232 = pneg %p65
        $region14: #{tpu_custom_call.1} parent=11 // pred_check_branch
          %234 = sbr.rel (%p232) target = $region16
        $region15: #{tpu_custom_call.1} parent=11 // pred_region
          %236 = vsyncadd [#allocation3], 0
          %s237 = sshll.u32 %s1, 4
          %s238 = int_to_ptr.hbm [resolvable:$true] %s237
          %s239 = sshll.u32 [#allocation2], 4
          %s240 = int_to_ptr.vmem [resolvable:$true] %s239
          %245 = dma.hbm_to_vmem [thread:$0]  %s238, 512, %s240, [#allocation3], 256, 256, 16
        $region16: #{tpu_custom_call.1} parent=11 // pred_fallthru
          _
        // Predicated region
        $region17: #{tpu_custom_call.1} parent=11 // pred_check
          %p246 = pneg %p86
        $region18: #{tpu_custom_call.1} parent=11 // pred_check_branch
          %248 = sbr.rel (%p246) target = $region20
        $region19: #{tpu_custom_call.1} parent=11 // pred_region
          _
        $region20: #{tpu_custom_call.1} parent=11 // pred_fallthru
          _
        // Predicated region
        $region21: #{tpu_custom_call.1} parent=11 // pred_check
          %p249 = pneg %p107
        $region22: #{tpu_custom_call.1} parent=11 // pred_check_branch
          %251 = sbr.rel (%p249) target = $region24
        $region23: #{tpu_custom_call.1} parent=11 // pred_region
          _
        $region24: #{tpu_custom_call.1} parent=11 // pred_fallthru
          _
        // Predicated region
        $region25: #{tpu_custom_call.1} parent=11 // pred_check
          %p252 = pneg %p128
        $region26: #{tpu_custom_call.1} parent=11 // pred_check_branch
          %254 = sbr.rel (%p252) target = $region28
        $region27: #{tpu_custom_call.1} parent=11 // pred_region
          _
        $region28: #{tpu_custom_call.1} parent=11 // pred_fallthru
          _
        // Predicated region
        $region29: #{tpu_custom_call.1} parent=11 // pred_check
          %p255 = pneg %p149
        $region30: #{tpu_custom_call.1} parent=11 // pred_check_branch
          %257 = sbr.rel (%p255) target = $region32
        $region31: #{tpu_custom_call.1} parent=11 // pred_region
          _
        $region32: #{tpu_custom_call.1} parent=11 // pred_fallthru
          _
        // Predicated region
        $region33: #{tpu_custom_call.1} parent=11 // pred_check
          %p258 = pneg %p170
        $region34: #{tpu_custom_call.1} parent=11 // pred_check_branch
          %260 = sbr.rel (%p258) target = $region36
        $region35: #{tpu_custom_call.1} parent=11 // pred_region
          _
        $region36: #{tpu_custom_call.1} parent=11 // pred_fallthru
          _
        // Predicated region
        $region37: #{tpu_custom_call.1} parent=11 // pred_check
          %p261 = pneg %p191
        $region38: #{tpu_custom_call.1} parent=11 // pred_check_branch
          %263 = sbr.rel (%p261) target = $region40
        $region39: #{tpu_custom_call.1} parent=11 // pred_region
          _
        $region40: #{tpu_custom_call.1} parent=11 // pred_fallthru
          _
      $region12: #{tpu_custom_call.1} parent=5 // pred_fallthru
        _
      %p264 = scmp.lt.s32.totalorder %s18, 2
      // Predicated region
      $region41: #{tpu_custom_call.1} parent=5 // pred_check
        %p265 = pneg %p264
      $region42: #{tpu_custom_call.1} parent=5 // pred_check_branch
        %267 = sbr.rel (%p265) target = $region44
      $region43: #{tpu_custom_call.1} parent=5 // pred_region
        // Predicated region
        $region45: #{tpu_custom_call.1} parent=43 // pred_check
          %p268 = pneg %p38
        $region46: #{tpu_custom_call.1} parent=43 // pred_check_branch
          %270 = sbr.rel (%p268) target = $region48
        $region47: #{tpu_custom_call.1} parent=43 // pred_region
          %p271 = scmp.lt.s32.totalorder %s18, 1
          %s272 = scalar_select %p271, %s18, 1
          %s273 = smul.addr %s272, 2
          %s274 = smul.addr %s273, 4
          %s275 = scalar_lea.vmem %s0, %s274
        $region48: #{tpu_custom_call.1} parent=43 // pred_fallthru
          _
      $region44: #{tpu_custom_call.1} parent=5 // pred_fallthru
        _
      %p276 = scmp.le.s32.totalorder 1, %s18
      %p277 = scmp.lt.s32.totalorder %s18, 3
      %p278 = pnand %p276, %p277
      %p279 = pneg %p278
      // Predicated region
      $region49: #{tpu_custom_call.1} parent=5 // pred_check
        _
      $region50: #{tpu_custom_call.1} parent=5 // pred_check_branch
        %281 = sbr.rel (%p278) target = $region52
      $region51: #{tpu_custom_call.1} parent=5 // pred_region
        %s282 = ssub.s32 %s18, 1
        // Predicated region
        $region53: #{tpu_custom_call.1} parent=51 // pred_check
          %p283 = pneg %p65
        $region54: #{tpu_custom_call.1} parent=51 // pred_check_branch
          %285 = sbr.rel (%p283) target = $region56
        $region55: #{tpu_custom_call.1} parent=51 // pred_region
          %287 = dma.done [#allocation3], 512
        $region56: #{tpu_custom_call.1} parent=51 // pred_fallthru
          _
        %p288 = scmp.lt.s32.totalorder %s23, 1
        %s289 = scalar_select %p288, %s23, 1
        %s290 = smul.addr %s289, 2
        %s291 = smul.addr %s290, 4
        %s292 = scalar_lea.vmem %s0, %s291
        %p293 = pneg %p44
        %p294 = pneg %p41
        %p295 = pneg %p65
        %p296 = pneg %p62
        %p297 = pneg %p86
        %p298 = pneg %p83
        %p299 = pneg %p107
        %p300 = pneg %p104
        %p301 = pneg %p128
        %p302 = pneg %p125
        %p303 = pneg %p149
        %p304 = pneg %p146
        %p305 = pneg %p170
        %p306 = pneg %p167
        %p307 = pneg %p191
        %p308 = pneg %p188
        %p309 = pneg %p217
        %p310 = pneg %p214
        %s311 = sand.u32 %s204, 1
        %s312 = scalar_lea.sflag [#allocation4], %s311
        %s313 = sand.u32 %s204, 1
        %s314 = smul.addr %s313, 16
        %s315 = scalar_lea.vmem [#allocation5], %s314
        %p316 = scmp.lt.s32.totalorder %s23, 1
        %s317 = scalar_select %p316, %s23, 1
        %s318 = smul.addr %s317, 2
        %s319 = smul.addr %s318, 4
        %s320 = scalar_lea.vmem %s0, %s319
        %v321 = vld [vmem:[#allocation2] sm:$0xff]
        %v322 = vld [vmem:[#allocation2 + $0x8] sm:$0xff]
        %v323 = vld [vmem:[#allocation2 + $0x10] sm:$0x1]
        %v324 = vld [vmem:[#allocation2 + $0x18] sm:$0x1]
        %v325 = vld [vmem:[%s320] sm:$0xff]
        %v326 = vld [vmem:[%s2] sm:$0xff]
        %v327 = vld [vmem:[%s3] sm:$0xff]
        %329 = vset.pattern.permute.xlu0 0
        %330 = vperm.xlu0 %329, %v327
        %v331 = vpop.permute.xlu0 %330
        %334 = vst [vmem:[#allocation1] ss:$2 sm:$0xff] %v325
        %v335 = vld.sshfl [vmem:[#allocation1] sm:$0xff pattern:$0x75316420]
        %v336 = vld.sshfl [vmem:[#allocation1 + $0x8] sm:$0xff pattern:$0x75316420]
        %vm337 = vcmask 31744
        %v339 = vsel %vm337, %v326, 0
        %vm341 = vcmask 1043456
        %v342 = vsel %vm341, %v335, 0
        %v344 = vsel %vm341, %v336, 0
        %346 = vmatpush.msra.mxu0 0.0
        %347 = vmatpush.msra.mxu0 0.0
        %348 = vmatpush.msra.mxu0 0.0
        %349 = vmatpush.msra.mxu0 0.0
        %350 = vmatpush.msra.mxu0 0.0
        %351 = vmatpush.msra.mxu0 0.0
        %352 = vmatpush.msra.mxu0 0.0
        %353 = vmatpush.msra.mxu0 0.0
        %354 = vmatpush.msra.mxu0 0.0
        %355 = vmatpush.msra.mxu0 0.0
        %356 = vmatpush.msra.mxu0 0.0
        %357 = vmatpush.msra.mxu0 0.0
        %358 = vmatpush.msra.mxu0 0.0
        %359 = vmatpush.msra.mxu0 0.0
        %360 = vmatpush.msra.mxu0 0.0
        %361 = vmatpush.msra.mxu0 %v342
        %362 = vmatmul.f32.gmra.mxu0 %v339
        %v363 = vpop.f32.mrf.mxu0
        %v364 = vadd.f32 %v331, %v363
        %365 = vdwg.mxu0
        %366 = vmatpush.msra.mxu0 0.0
        %367 = vmatpush.msra.mxu0 0.0
        %368 = vmatpush.msra.mxu0 0.0
        %369 = vmatpush.msra.mxu0 0.0
        %370 = vmatpush.msra.mxu0 0.0
        %371 = vmatpush.msra.mxu0 0.0
        %372 = vmatpush.msra.mxu0 0.0
        %373 = vmatpush.msra.mxu0 0.0
        %374 = vmatpush.msra.mxu0 0.0
        %375 = vmatpush.msra.mxu0 0.0
        %376 = vmatpush.msra.mxu0 0.0
        %377 = vmatpush.msra.mxu0 0.0
        %378 = vmatpush.msra.mxu0 0.0
        %379 = vmatpush.msra.mxu0 0.0
        %380 = vmatpush.msra.mxu0 0.0
        %381 = vmatpush.msra.mxu0 %v344
        %382 = vmatmul.f32.gmra.mxu0 %v339
        %v383 = vpop.f32.mrf.mxu0
        %v384 = vadd.f32 %v331, %v383
        %385 = vdwg.mxu0
        %v386 = vmax.f32 %v364, 0.0
        %v387 = vmax.f32 %v384, 0.0
        %v388 = vld [vmem:[%s4] sm:$0xff]
        %v389 = vld [vmem:[%s5] sm:$0xff]
        %390 = vrot.lane.b32.xlu0 %v386, 17
        %v391 = vpop.permute.xlu0 %390
        %392 = vrot.lane.b32.xlu0 %v387, 17
        %v393 = vpop.permute.xlu0 %392
        %v394 = vlaneseq
        %v395 = vand.u32 %v394, 127
        %vm396 = vcmp.lt.s32.totalorder %v395, 17
        %v397 = vsel %vm396, %v391, %v393
        %v398 = vsel %vm396, %v393, %v391
        %v399 = vperm.slane %v321, 0
        %v400 = vperm.slane %v322, 0
        %v401 = vmul.f32 %v398, %v399
        %v402 = vmul.f32 %v397, %v400
        %403 = vrot.lane.b32.xlu0 %v386, 16
        %v404 = vpop.permute.xlu0 %403
        %405 = vrot.lane.b32.xlu0 %v387, 16
        %v406 = vpop.permute.xlu0 %405
        %vm407 = vcmp.lt.s32.totalorder %v395, 16
        %v408 = vsel %vm407, %v404, %v406
        %v409 = vsel %vm407, %v406, %v404
        %v410 = vperm.slane %v321, 1
        %v411 = vperm.slane %v322, 1
        %v412 = vmul.f32 %v409, %v410
        %v413 = vmul.f32 %v408, %v411
        %414 = vrot.lane.b32.xlu0 %v386, 15
        %v415 = vpop.permute.xlu0 %414
        %416 = vrot.lane.b32.xlu0 %v387, 15
        %v417 = vpop.permute.xlu0 %416
        %vm418 = vcmp.lt.s32.totalorder %v395, 15
        %v419 = vsel %vm418, %v415, %v417
        %v420 = vsel %vm418, %v417, %v415
        %v421 = vperm.slane %v321, 2
        %v422 = vperm.slane %v322, 2
        %v423 = vmul.f32 %v420, %v421
        %v424 = vmul.f32 %v419, %v422
        %425 = vrot.lane.b32.xlu0 %v386, 1
        %v426 = vpop.permute.xlu0 %425
        %427 = vrot.lane.b32.xlu0 %v387, 1
        %v428 = vpop.permute.xlu0 %427
        %vm429 = vcmp.lt.s32.totalorder %v395, 1
        %v430 = vsel %vm429, %v426, %v428
        %v431 = vsel %vm429, %v428, %v426
        %v432 = vperm.slane %v321, 3
        %v433 = vperm.slane %v322, 3
        %v434 = vmul.f32 %v431, %v432
        %v435 = vmul.f32 %v430, %v433
        %436 = vrot.lane.b32.xlu0 %v386, 127
        %v437 = vpop.permute.xlu0 %436
        %438 = vrot.lane.b32.xlu0 %v387, 127
        %v439 = vpop.permute.xlu0 %438
        %vm440 = vcmp.lt.s32.totalorder %v395, 127
        %v441 = vsel %vm440, %v437, %v439
        %v442 = vsel %vm440, %v439, %v437
        %v443 = vperm.slane %v321, 5
        %v444 = vperm.slane %v322, 5
        %v445 = vmul.f32 %v441, %v443
        %v446 = vmul.f32 %v442, %v444
        %447 = vrot.lane.b32.xlu0 %v386, 113
        %v448 = vpop.permute.xlu0 %447
        %449 = vrot.lane.b32.xlu0 %v387, 113
        %v450 = vpop.permute.xlu0 %449
        %vm451 = vcmp.lt.s32.totalorder %v395, 113
        %v452 = vsel %vm451, %v448, %v450
        %v453 = vsel %vm451, %v450, %v448
        %v454 = vperm.slane %v321, 6
        %v455 = vperm.slane %v322, 6
        %v456 = vmul.f32 %v452, %v454
        %v457 = vmul.f32 %v453, %v455
        %458 = vrot.lane.b32.xlu0 %v386, 112
        %v459 = vpop.permute.xlu0 %458
        %460 = vrot.lane.b32.xlu0 %v387, 112
        %v461 = vpop.permute.xlu0 %460
        %vm462 = vcmp.lt.s32.totalorder %v395, 112
        %v463 = vsel %vm462, %v459, %v461
        %v464 = vsel %vm462, %v461, %v459
        %v465 = vperm.slane %v321, 7
        %v466 = vperm.slane %v322, 7
        %v467 = vmul.f32 %v463, %v465
        %v468 = vmul.f32 %v464, %v466
        %469 = vrot.lane.b32.xlu0 %v386, 111
        %v470 = vpop.permute.xlu0 %469
        %471 = vrot.lane.b32.xlu0 %v387, 111
        %v472 = vpop.permute.xlu0 %471
        %vm473 = vcmp.lt.s32.totalorder %v395, 111
        %v474 = vsel %vm473, %v470, %v472
        %v475 = vsel %vm473, %v472, %v470
        %v476 = vperm.slane %v323, 0
        %v477 = vperm.slane %v324, 0
        %v478 = vmul.f32 %v474, %v476
        %v479 = vmul.f32 %v475, %v477
        %481 = vset.pattern.permute.xlu0 0
        %482 = vperm.xlu0 %481, %v389
        %v483 = vpop.permute.xlu0 %482
        %vm485 = vcmask 588800
        %v487 = vsel %vm485, %v388, 0
        %489 = vmatpush.msra.mxu0 0.0
        %490 = vmatpush.msra.mxu0 0.0
        %491 = vmatpush.msra.mxu0 0.0
        %492 = vmatpush.msra.mxu0 0.0
        %493 = vmatpush.msra.mxu0 0.0
        %494 = vmatpush.msra.mxu0 0.0
        %495 = vmatpush.msra.mxu0 0.0
        %496 = vmatpush.msra.mxu0 %v478
        %497 = vmatpush.msra.mxu0 %v467
        %498 = vmatpush.msra.mxu0 %v456
        %499 = vmatpush.msra.mxu0 %v445
        %500 = vmatpush.msra.mxu0 %v386
        %501 = vmatpush.msra.mxu0 %v434
        %502 = vmatpush.msra.mxu0 %v423
        %503 = vmatpush.msra.mxu0 %v412
        %504 = vmatpush.msra.mxu0 %v401
        %505 = vmatmul.f32.gmra.mxu0 %v487
        %v506 = vpop.f32.mrf.mxu0
        %v507 = vadd.f32 %v483, %v506
        %508 = vdwg.mxu0
        %509 = vmatpush.msra.mxu0 0.0
        %510 = vmatpush.msra.mxu0 0.0
        %511 = vmatpush.msra.mxu0 0.0
        %512 = vmatpush.msra.mxu0 0.0
        %513 = vmatpush.msra.mxu0 0.0
        %514 = vmatpush.msra.mxu0 0.0
        %515 = vmatpush.msra.mxu0 0.0
        %516 = vmatpush.msra.mxu0 %v479
        %517 = vmatpush.msra.mxu0 %v468
        %518 = vmatpush.msra.mxu0 %v457
        %519 = vmatpush.msra.mxu0 %v446
        %520 = vmatpush.msra.mxu0 %v387
        %521 = vmatpush.msra.mxu0 %v435
        %522 = vmatpush.msra.mxu0 %v424
        %523 = vmatpush.msra.mxu0 %v413
        %524 = vmatpush.msra.mxu0 %v402
        %525 = vmatmul.f32.gmra.mxu0 %v487
        %v526 = vpop.f32.mrf.mxu0
        %v527 = vadd.f32 %v483, %v526
        %528 = vdwg.mxu0
        %v529 = vmax.f32 %v507, 0.0
        %v530 = vmax.f32 %v527, 0.0
        %v531 = vld [vmem:[%s6] sm:$0xff]
        %v532 = vld [vmem:[%s7] sm:$0xff]
        %533 = vrot.lane.b32.xlu0 %v529, 17
        %v534 = vpop.permute.xlu0 %533
        %535 = vrot.lane.b32.xlu0 %v530, 17
        %v536 = vpop.permute.xlu0 %535
        %v537 = vsel %vm396, %v534, %v536
        %v538 = vsel %vm396, %v536, %v534
        %v539 = vmul.f32 %v538, %v399
        %v540 = vmul.f32 %v537, %v400
        %541 = vrot.lane.b32.xlu0 %v529, 16
        %v542 = vpop.permute.xlu0 %541
        %543 = vrot.lane.b32.xlu0 %v530, 16
        %v544 = vpop.permute.xlu0 %543
        %v545 = vsel %vm407, %v542, %v544
        %v546 = vsel %vm407, %v544, %v542
        %v547 = vmul.f32 %v546, %v410
        %v548 = vmul.f32 %v545, %v411
        %549 = vrot.lane.b32.xlu0 %v529, 15
        %v550 = vpop.permute.xlu0 %549
        %551 = vrot.lane.b32.xlu0 %v530, 15
        %v552 = vpop.permute.xlu0 %551
        %v553 = vsel %vm418, %v550, %v552
        %v554 = vsel %vm418, %v552, %v550
        %v555 = vmul.f32 %v554, %v421
        %v556 = vmul.f32 %v553, %v422
        %557 = vrot.lane.b32.xlu0 %v529, 1
        %v558 = vpop.permute.xlu0 %557
        %559 = vrot.lane.b32.xlu0 %v530, 1
        %v560 = vpop.permute.xlu0 %559
        %v561 = vsel %vm429, %v558, %v560
        %v562 = vsel %vm429, %v560, %v558
        %v563 = vmul.f32 %v562, %v432
        %v564 = vmul.f32 %v561, %v433
        %565 = vrot.lane.b32.xlu0 %v529, 127
        %v566 = vpop.permute.xlu0 %565
        %567 = vrot.lane.b32.xlu0 %v530, 127
        %v568 = vpop.permute.xlu0 %567
        %v569 = vsel %vm440, %v566, %v568
        %v570 = vsel %vm440, %v568, %v566
        %v571 = vmul.f32 %v569, %v443
        %v572 = vmul.f32 %v570, %v444
        %573 = vrot.lane.b32.xlu0 %v529, 113
        %v574 = vpop.permute.xlu0 %573
        %575 = vrot.lane.b32.xlu0 %v530, 113
        %v576 = vpop.permute.xlu0 %575
        %v577 = vsel %vm451, %v574, %v576
        %v578 = vsel %vm451, %v576, %v574
        %v579 = vmul.f32 %v577, %v454
        %v580 = vmul.f32 %v578, %v455
        %581 = vrot.lane.b32.xlu0 %v529, 112
        %v582 = vpop.permute.xlu0 %581
        %583 = vrot.lane.b32.xlu0 %v530, 112
        %v584 = vpop.permute.xlu0 %583
        %v585 = vsel %vm462, %v582, %v584
        %v586 = vsel %vm462, %v584, %v582
        %v587 = vmul.f32 %v585, %v465
        %v588 = vmul.f32 %v586, %v466
        %589 = vrot.lane.b32.xlu0 %v529, 111
        %v590 = vpop.permute.xlu0 %589
        %591 = vrot.lane.b32.xlu0 %v530, 111
        %v592 = vpop.permute.xlu0 %591
        %v593 = vsel %vm473, %v590, %v592
        %v594 = vsel %vm473, %v592, %v590
        %v595 = vmul.f32 %v593, %v476
        %v596 = vmul.f32 %v594, %v477
        %598 = vset.pattern.permute.xlu0 0
        %599 = vperm.xlu0 %598, %v532
        %v600 = vpop.permute.xlu0 %599
        %v603 = vsel %vm485, %v531, 0
        %605 = vmatpush.msra.mxu0 0.0
        %606 = vmatpush.msra.mxu0 0.0
        %607 = vmatpush.msra.mxu0 0.0
        %608 = vmatpush.msra.mxu0 0.0
        %609 = vmatpush.msra.mxu0 0.0
        %610 = vmatpush.msra.mxu0 0.0
        %611 = vmatpush.msra.mxu0 0.0
        %612 = vmatpush.msra.mxu0 %v595
        %613 = vmatpush.msra.mxu0 %v587
        %614 = vmatpush.msra.mxu0 %v579
        %615 = vmatpush.msra.mxu0 %v571
        %616 = vmatpush.msra.mxu0 %v529
        %617 = vmatpush.msra.mxu0 %v563
        %618 = vmatpush.msra.mxu0 %v555
        %619 = vmatpush.msra.mxu0 %v547
        %620 = vmatpush.msra.mxu0 %v539
        %621 = vmatmul.f32.gmra.mxu0 %v603
        %v622 = vpop.f32.mrf.mxu0
        %v623 = vadd.f32 %v600, %v622
        %624 = vdwg.mxu0
        %625 = vmatpush.msra.mxu0 0.0
        %626 = vmatpush.msra.mxu0 0.0
        %627 = vmatpush.msra.mxu0 0.0
        %628 = vmatpush.msra.mxu0 0.0
        %629 = vmatpush.msra.mxu0 0.0
        %630 = vmatpush.msra.mxu0 0.0
        %631 = vmatpush.msra.mxu0 0.0
        %632 = vmatpush.msra.mxu0 %v596
        %633 = vmatpush.msra.mxu0 %v588
        %634 = vmatpush.msra.mxu0 %v580
        %635 = vmatpush.msra.mxu0 %v572
        %636 = vmatpush.msra.mxu0 %v530
        %637 = vmatpush.msra.mxu0 %v564
        %638 = vmatpush.msra.mxu0 %v556
        %639 = vmatpush.msra.mxu0 %v548
        %640 = vmatpush.msra.mxu0 %v540
        %641 = vmatmul.f32.gmra.mxu0 %v603
        %v642 = vpop.f32.mrf.mxu0
        %v643 = vadd.f32 %v600, %v642
        %644 = vdwg.mxu0
        %v645 = vmax.f32 %v623, 0.0
        %v646 = vmax.f32 %v643, 0.0
        %647 = vst [vmem:[%s315] sm:$0xff] %v645
        %648 = vst [vmem:[%s315 + $0x8] sm:$0xff] %v646
        %s649 = sand.u32 %s204, 1
        %s650 = scalar_lea.sflag [#allocation4], %s649
        %s651 = sand.u32 %s204, 1
        %s652 = smul.addr %s651, 16
        %s653 = scalar_lea.vmem [#allocation5], %s652
        // Predicated region
        $region57: #{tpu_custom_call.1} parent=51 // pred_check
          %p654 = pneg %p214
        $region58: #{tpu_custom_call.1} parent=51 // pred_check_branch
          %656 = sbr.rel (%p654) target = $region60
        $region59: #{tpu_custom_call.1} parent=51 // pred_region
          %658 = vsyncadd %s650, 0
          %s659 = smul.addr %s23, 2
          %s660 = smul.addr %s659, 8
          %s661 = scalar_lea.hbm %s8, %s660
          %s663 = sshll.u32 %s653, 4
          %s664 = int_to_ptr.vmem [resolvable:$true] %s663
          %s665 = sshll.u32 %s661, 4
          %s666 = int_to_ptr.hbm [resolvable:$true] %s665
          %668 = dma.vmem_to_hbm [thread:$0]  %s664, 256, %s666, %s650
        $region60: #{tpu_custom_call.1} parent=51 // pred_fallthru
          _
      $region52: #{tpu_custom_call.1} parent=5 // pred_fallthru
        _
      %p669 = scmp.le.s32.totalorder 2, %s18
      // Predicated region
      $region61: #{tpu_custom_call.1} parent=5 // pred_check
        %p670 = pneg %p669
      $region62: #{tpu_custom_call.1} parent=5 // pred_check_branch
        %672 = sbr.rel (%p670) target = $region64
      $region63: #{tpu_custom_call.1} parent=5 // pred_region
        %s673 = ssub.s32 %s18, 2
        // Predicated region
        $region65: #{tpu_custom_call.1} parent=63 // pred_check
          %p674 = pneg %p220
        $region66: #{tpu_custom_call.1} parent=63 // pred_check_branch
          %676 = sbr.rel (%p674) target = $region68
        $region67: #{tpu_custom_call.1} parent=63 // pred_region
          %s677 = sand.u32 %s205, 1
          %s678 = scalar_lea.sflag [#allocation4], %s677
          %s679 = sand.u32 %s205, 1
          %s680 = smul.addr %s679, 16
          %s681 = scalar_lea.vmem [#allocation5], %s680
          %683 = dma.done %s678, 256
        $region68: #{tpu_custom_call.1} parent=63 // pred_fallthru
          _
      $region64: #{tpu_custom_call.1} parent=5 // pred_fallthru
        _
    $region6: #{tpu_custom_call.1} parent=1 // loop_footer
      %s22 = sadd.s32 1, %s18
    $region7: #{tpu_custom_call.1} parent=1 // loop_footer_branch
      %17 = sbr.rel target = $region3
    $region8: #{tpu_custom_call.1} parent=1 // loop_exit
      _
    %684 = vsyncpa [#allocation3], 1
    %s685 = scalar_lea.sflag [#allocation3], 1
    %686 = vsyncpa %s685, 1
    %687 = vsyncpa [#allocation4], 1
    %s688 = scalar_lea.sflag [#allocation4], 1
    %689 = vsyncpa %s688, 1

</llo_original>
